<compile_context>
chip_gen: v5e
topology: v5e:2x2
jax: 0.10.0
libtpu: 0.0.40
codegen_flags: <defaults>
</compile_context>

<pallas_src>
import math

import jax
import jax.numpy as jnp
from jax import lax
from jax.experimental import pallas as pl
from jax.experimental.pallas import tpu as pltpu


def _round_up(x: int, m: int) -> int:
    return (x + m - 1) // m * m


def _largest_divisor_tile(kp: int, max_tk: int) -> int:
    """Largest multiple of 128 that divides kp (kp itself a multiple of 128) and <= max_tk."""
    m = kp // 128
    limit = max(1, max_tk // 128)
    best = 1
    for d in range(1, m + 1):
        if m % d == 0 and d <= limit:
            best = d
    return 128 * best


# -----------------------------------------------------------------------------
# Kernels.  The PyTorch weight layout (D_out, D_in) is kept: the MXU contracts
# the last dim of both operands (trans_b form, supported natively), so no
# wrapper- or kernel-side transpose of W is needed, and for small D_out the
# (N, K) layout is the lane-dense one.
# -----------------------------------------------------------------------------

def _linear_kernel_single_k(x_ref, w_ref, b_ref, o_ref):
    """Whole reduction in one grid step: o = x @ W.T + b (f32 accumulate on MXU)."""
    acc = lax.dot_general(
        x_ref[...],
        w_ref[...],
        dimension_numbers=(((1,), (1,)), ((), ())),
        preferred_element_type=jnp.float32,
    )
    o_ref[...] = (acc + b_ref[...]).astype(o_ref.dtype)


def _linear_kernel_multi_k(x_ref, w_ref, b_ref, o_ref, acc_ref):
    """K-tiled fallback for very large D_in: f32 accumulator resident across K."""
    k = pl.program_id(2)

    @pl.when(k == 0)
    def _init():
        acc_ref[...] = jnp.zeros_like(acc_ref)

    acc_ref[...] += lax.dot_general(
        x_ref[...],
        w_ref[...],
        dimension_numbers=(((1,), (1,)), ((), ())),
        preferred_element_type=jnp.float32,
    )

    @pl.when(k == pl.num_programs(2) - 1)
    def _finalize():
        o_ref[...] = (acc_ref[...] + b_ref[...]).astype(o_ref.dtype)


def make_softmax_model_forward(weight, bias, *, compute_dtype=None, max_tk=2048,
                               single_k_vmem_budget=8 << 20):
    """One-time parameter prep (pad/cast, amortized across calls) + jitted forward."""
    D_out, D_in = weight.shape
    param_dtype = jnp.dtype(weight.dtype)
    compute_dtype = param_dtype if compute_dtype is None else jnp.dtype(compute_dtype)
    itemsize = compute_dtype.itemsize
    # bf16/int8 pack multiple rows per sublane -> keep second-minor dims at 16.
    sub = 16 if itemsize < 4 else 8

    # --- N (output-feature) padding: do NOT inflate a tiny D_out to 128. ---
    if D_out <= 128:
        Np = _round_up(D_out, 16)
        tn = Np                       # block last dim == full padded dim -> legal
    else:
        tn = 128
        Np = _round_up(D_out, tn)

    # --- K padding: lane multiple first, tile size second (tk always divides Kp). ---
    Kp = _round_up(D_in, 128)
    tm_cap = 128

    def _step_vmem_bytes(tk):
        # double-buffered x and W input tiles + double-buffered f32 output tile
        return 2 * (tm_cap * tk + tn * tk) * itemsize + 2 * tm_cap * tn * 4

    if _step_vmem_bytes(Kp) <= single_k_vmem_budget:
        tk = Kp                       # whole reduction in a single grid step
    else:
        tk = _largest_divisor_tile(Kp, max_tk)
    multi_k = tk != Kp

    # --- One-time (amortized) pad + cast of the parameters, OUTSIDE the jit. ---
    wp = weight.astype(compute_dtype)
    if (Np, Kp) != (D_out, D_in):
        wp = jnp.pad(wp, ((0, Np - D_out), (0, Kp - D_in)))
    bp = jnp.reshape(bias, (1, D_out)).astype(jnp.float32)   # bias added in f32
    if Np != D_out:
        bp = jnp.pad(bp, ((0, 0), (0, Np - D_out)))
    wp = jax.block_until_ready(wp)
    bp = jax.block_until_ready(bp)

    @jax.jit
    def forward(x):
        B = x.shape[0]
        out_dtype = jnp.dtype(jnp.result_type(x.dtype, param_dtype))
        x2d = jnp.reshape(x, (B, D_in)).astype(compute_dtype)

        tm = min(tm_cap, _round_up(B, sub))
        Bp = _round_up(B, tm)
        if (Bp, Kp) != (B, D_in):
            x2d = jnp.pad(x2d, ((0, Bp - B), (0, Kp - D_in)))

        cost = pl.CostEstimate(
            flops=2 * Bp * Kp * Np,
            transcendentals=0,
            bytes_accessed=(itemsize * (Bp * Kp + Np * Kp)
                            + 4 * Np + out_dtype.itemsize * Bp * Np),
        )

        # VMEM budget: only set an explicit limit if the tiles actually need it
        # (relevant for v7x's smaller 64 MiB VMEM; our budgeted tiles stay small).
        vmem_need = (2 * (tm * tk + tn * tk) * itemsize
                     + 2 * tm * tn * out_dtype.itemsize
                     + (tm * tn * 4 if multi_k else 0)
                     + (1 << 20))
        vmem_limit = int(min(vmem_need, 64 << 20)) if vmem_need > (16 << 20) else None

        if multi_k:
            grid = (Bp // tm, Np // tn, Kp // tk)
            grid_spec = pltpu.PrefetchScalarGridSpec(
                num_scalar_prefetch=0,
                grid=grid,
                in_specs=[
                    pl.BlockSpec((tm, tk), lambda i, j, k: (i, k)),  # x: (B, K)
                    pl.BlockSpec((tn, tk), lambda i, j, k: (j, k)),  # W: (N, K)
                    pl.BlockSpec((1, tn), lambda i, j, k: (0, j)),   # b: (1, N)
                ],
                out_specs=pl.BlockSpec((tm, tn), lambda i, j, k: (i, j)),
                scratch_shapes=[pltpu.VMEM((tm, tn), jnp.float32)],
            )
            kernel = _linear_kernel_multi_k
            semantics = ("parallel", "parallel", "arbitrary")
        else:
            grid = (Bp // tm, Np // tn)
            grid_spec = pltpu.PrefetchScalarGridSpec(
                num_scalar_prefetch=0,
                grid=grid,
                in_specs=[
                    pl.BlockSpec((tm, Kp), lambda i, j: (i, 0)),     # x: (B, K)
                    pl.BlockSpec((tn, Kp), lambda i, j: (j, 0)),     # W: (N, K)
                    pl.BlockSpec((1, tn), lambda i, j: (0, j)),      # b: (1, N)
                ],
                out_specs=pl.BlockSpec((tm, tn), lambda i, j: (i, j)),
            )
            kernel = _linear_kernel_single_k
            semantics = ("parallel", "parallel")

        out_padded = pl.pallas_call(
            kernel,
            out_shape=jax.ShapeDtypeStruct((Bp, Np), out_dtype),
            grid_spec=grid_spec,
            compiler_params=pltpu.CompilerParams(
                dimension_semantics=semantics,
                vmem_limit_bytes=vmem_limit,
            ),
            cost_estimate=cost,
        )(x2d, wp, bp)

        return out_padded[:B, :D_out]

    return forward


if __name__ == "__main__":
    # MNIST-like shapes: batch=8, 1 channel, 28x28 spatial -> D_in=784, D_out=10.
    B, C, H, W = 8, 1, 28, 28
    D_in = C * H * W
    D_out = 10

    key = jax.random.PRNGKey(0)
    kx, kw, kb = jax.random.split(key, 3)

    x = jax.random.normal(kx, (B, C, H, W), dtype=jnp.float32)

    # Deterministic param init mimicking nn.Linear's uniform(-1/sqrt(D_in), 1/sqrt(D_in)).
    bound = 1.0 / math.sqrt(D_in)
    weight = jax.random.uniform(kw, (D_out, D_in), jnp.float32, -bound, bound)
    bias = jax.random.uniform(kb, (D_out,), jnp.float32, -bound, bound)

    # Plain-JAX reference (same semantics as the PyTorch forward: flatten + Linear,
    # no softmax applied in forward()).
    ref = jnp.reshape(x, (B, D_in)) @ weight.T + bias

    # Exact-semantics f32 path.
    fwd_f32 = make_softmax_model_forward(weight, bias, compute_dtype=jnp.float32)
    out = jax.block_until_ready(fwd_f32(x))
    assert out.shape == (B, D_out)
    assert jnp.allclose(out, ref, atol=1e-5, rtol=1e-5)

    # Perf path: bf16 inputs, f32 MXU accumulation (recommended for v5e/v6e/v7x).
    fwd_bf16 = make_softmax_model_forward(weight, bias, compute_dtype=jnp.bfloat16)
    out_bf16 = jax.block_until_ready(fwd_bf16(x))
    assert out_bf16.shape == (B, D_out)
    assert jnp.allclose(out_bf16, ref, atol=3e-2, rtol=3e-2)

    print("KERNEL_OK")
</pallas_src>

<mosaic_0001>
module attributes {stable_mosaic.version = 11 : i64} {
  func.func @_linear_kernel_single_k(%arg0: i32, %arg1: i32, %arg2: memref<8x896xf32, #tpu.memory_space<vmem>>, %arg3: memref<16x896xf32, #tpu.memory_space<vmem>>, %arg4: memref<1x16xf32, #tpu.memory_space<vmem>>, %arg5: memref<8x16xf32, #tpu.memory_space<vmem>>) attributes {dimension_semantics = [#tpu.dimension_semantics<parallel>, #tpu.dimension_semantics<parallel>], iteration_bounds = array<i64: 1, 1>, scalar_prefetch = 0 : i64, scratch_operands = 0 : i64, tpu.core_type = #tpu.core_type<tc>, window_params = [{transform_indices = @transform_0, window_bounds = array<i64: 8, 896>}, {transform_indices = @transform_1, window_bounds = array<i64: 16, 896>}, {transform_indices = @transform_2, window_bounds = array<i64: 1, 16>}, {transform_indices = @transform_3, window_bounds = array<i64: 8, 16>}]} {
    %c0 = arith.constant 0 : index
    %c0_0 = arith.constant 0 : index
    %0 = vector.load %arg2[%c0, %c0_0] : memref<8x896xf32, #tpu.memory_space<vmem>>, vector<8x896xf32>
    %c0_1 = arith.constant 0 : index
    %c0_2 = arith.constant 0 : index
    %1 = vector.load %arg3[%c0_1, %c0_2] : memref<16x896xf32, #tpu.memory_space<vmem>>, vector<16x896xf32>
    %cst = arith.constant dense<0.000000e+00> : vector<8x16xf32>
    %2 = tpu.matmul %0, %1, %cst {dimension_numbers = #tpu.dot_dimension_numbers<[1], [1], [0], [0], [0, 0, 1, 0], [], []>} : vector<8x896xf32>, vector<16x896xf32>, vector<8x16xf32> -> vector<8x16xf32>
    %c0_3 = arith.constant 0 : index
    %c0_4 = arith.constant 0 : index
    %3 = vector.load %arg4[%c0_3, %c0_4] : memref<1x16xf32, #tpu.memory_space<vmem>>, vector<1x16xf32>
    %4 = vector.broadcast %3 : vector<1x16xf32> to vector<8x16xf32>
    %5 = arith.addf %2, %4 : vector<8x16xf32>
    %c0_5 = arith.constant 0 : index
    %c0_6 = arith.constant 0 : index
    %6 = vector.load %arg5[%c0_5, %c0_6] : memref<8x16xf32, #tpu.memory_space<vmem>>, vector<8x16xf32>
    tpu.vector_store %arg5[%c0_5, %c0_6], %5 {strides = array<i32>} : memref<8x16xf32, #tpu.memory_space<vmem>>, vector<8x16xf32>,
    return
  }
  func.func @transform_0(%arg0: i32, %arg1: i32) -> (i32, i32) {
    %c0_i32 = arith.constant 0 : i32
    %c0_i32_0 = arith.constant 0 : i32
    return %arg0, %c0_i32 : i32, i32
  }
  func.func @transform_1(%arg0: i32, %arg1: i32) -> (i32, i32) {
    %c0_i32 = arith.constant 0 : i32
    %c0_i32_0 = arith.constant 0 : i32
    return %arg1, %c0_i32 : i32, i32
  }
  func.func @transform_2(%arg0: i32, %arg1: i32) -> (i32, i32) {
    %c0_i32 = arith.constant 0 : i32
    %c0_i32_0 = arith.constant 0 : i32
    return %c0_i32, %arg1 : i32, i32
  }
  func.func @transform_3(%arg0: i32, %arg1: i32) -> (i32, i32) {
    %c0_i32 = arith.constant 0 : i32
    return %arg0, %arg1 : i32, i32
  }
}

</mosaic_0001>

<llo_original>
// kernel: forward.1
$region0: #{forward.1}
  #allocation0 [shape = 'u32[]', space=smem, size = 0x4, offset = 0x4, fixed_abs, tag = 'smem constant byte address 0x4 - core index']
  #allocation1 [shape = 'u32[72,128]{1,0:T(1,128)}', space=vmem, size = 0x9000, scoped, tag = 'internal scratch']
  %s0 = inlined_call_operand.vmem [shape: f32[8,896], index: 0, kind: input, shape index: {}]
  %s1 = inlined_call_operand.vmem [shape: f32[16,896], index: 1, kind: input, shape index: {}]
  %s2 = inlined_call_operand.vmem [shape: f32[1,16], index: 2, kind: input, shape index: {}]
  %s3 = inlined_call_operand.hbm [shape: f32[8,16], index: 3, kind: output, shape index: {}]
  %s4 = sld [smem:[#allocation0]]
  $region22: #{forward.1} parent=0
    _
  %s6 = ssub.s32 1, %s4
  %s7 = scalar_select 0, %s6, %s4
  $region1: #{forward.1} parent=0
    #allocation2 [shape = 'u8[4096]{0}', space=vmem, size = 0x1000, scoped, tag = 'output window, operand 0, single buffered']
    #allocation3 [shape = 's32[1]{0}', space=sflag, size = 0x4, scoped, tag = 'scoped memory for forward.1']
    %8 = vsyncpa [#allocation3], 0
    // Predicated region
    $region2: #{forward.1} parent=1 // pred_check
      _
    $region3: #{forward.1} parent=1 // pred_check_branch
      %10 = sbr.rel (0) target = $region5
    $region4: #{forward.1} parent=1 // pred_region
      _
    $region5: #{forward.1} parent=1 // pred_fallthru
      _
    // Predicated region
    $region6: #{forward.1} parent=1 // pred_check
      _
    $region7: #{forward.1} parent=1 // pred_check_branch
      %12 = sbr.rel (0) target = $region9
    $region8: #{forward.1} parent=1 // pred_region
      _
    $region9: #{forward.1} parent=1 // pred_fallthru
      _
    // Predicated region
    $region10: #{forward.1} parent=1 // pred_check
      _
    $region11: #{forward.1} parent=1 // pred_check_branch
      %14 = sbr.rel (0) target = $region13
    $region12: #{forward.1} parent=1 // pred_region
      _
    $region13: #{forward.1} parent=1 // pred_fallthru
      _
    %v15 = vld [vmem:[%s0] sm:$0xff]
    %v16 = vld [vmem:[%s0 + $0x8] sm:$0xff]
    %v17 = vld [vmem:[%s0 + $0x10] sm:$0xff]
    %v18 = vld [vmem:[%s0 + $0x18] sm:$0xff]
    %v19 = vld [vmem:[%s0 + $0x20] sm:$0xff]
    %v20 = vld [vmem:[%s0 + $0x28] sm:$0xff]
    %v21 = vld [vmem:[%s0 + $0x30] sm:$0xff]
    %v22 = vld [vmem:[%s1] sm:$0xff]
    %v23 = vld [vmem:[%s1 + $0x8] sm:$0xff]
    %v24 = vld [vmem:[%s1 + $0x10] sm:$0xff]
    %v25 = vld [vmem:[%s1 + $0x18] sm:$0xff]
    %v26 = vld [vmem:[%s1 + $0x20] sm:$0xff]
    %v27 = vld [vmem:[%s1 + $0x28] sm:$0xff]
    %v28 = vld [vmem:[%s1 + $0x30] sm:$0xff]
    %v29 = vld [vmem:[%s1 + $0x38] sm:$0xff]
    %v30 = vld [vmem:[%s1 + $0x40] sm:$0xff]
    %v31 = vld [vmem:[%s1 + $0x48] sm:$0xff]
    %v32 = vld [vmem:[%s1 + $0x50] sm:$0xff]
    %v33 = vld [vmem:[%s1 + $0x58] sm:$0xff]
    %v34 = vld [vmem:[%s1 + $0x60] sm:$0xff]
    %v35 = vld [vmem:[%s1 + $0x68] sm:$0xff]
    %v36 = vld [vmem:[%s2] sm:$0x1]
    %v38 = vperm.slane %v36, 0
    %40 = vmatpush.xpose.msra.mxu0 0.0
    %41 = vmatpush.xpose.msra.mxu0 0.0
    %42 = vmatpush.xpose.msra.mxu0 0.0
    %43 = vmatpush.xpose.msra.mxu0 0.0
    %44 = vmatpush.xpose.msra.mxu0 0.0
    %45 = vmatpush.xpose.msra.mxu0 0.0
    %46 = vmatpush.xpose.msra.mxu0 0.0
    %47 = vmatpush.xpose.msra.mxu0 0.0
    %48 = vmatpush.xpose.msra.mxu0 0.0
    %49 = vmatpush.xpose.msra.mxu0 0.0
    %50 = vmatpush.xpose.msra.mxu0 0.0
    %51 = vmatpush.xpose.msra.mxu0 0.0
    %52 = vmatpush.xpose.msra.mxu0 0.0
    %53 = vmatpush.xpose.msra.mxu0 0.0
    %54 = vmatpush.xpose.msra.mxu0 %v29
    %55 = vmatpush.xpose.msra.mxu0 %v22
    %56 = vmatmul.f32.gmra.mxu0 %v15
    %v57 = vpop.f32.mrf.mxu0
    %v58 = vadd.f32 %v38, %v57
    %59 = vdwg.mxu0
    %60 = vmatpush.xpose.msra.mxu0 0.0
    %61 = vmatpush.xpose.msra.mxu0 0.0
    %62 = vmatpush.xpose.msra.mxu0 0.0
    %63 = vmatpush.xpose.msra.mxu0 0.0
    %64 = vmatpush.xpose.msra.mxu0 0.0
    %65 = vmatpush.xpose.msra.mxu0 0.0
    %66 = vmatpush.xpose.msra.mxu0 0.0
    %67 = vmatpush.xpose.msra.mxu0 0.0
    %68 = vmatpush.xpose.msra.mxu0 0.0
    %69 = vmatpush.xpose.msra.mxu0 0.0
    %70 = vmatpush.xpose.msra.mxu0 0.0
    %71 = vmatpush.xpose.msra.mxu0 0.0
    %72 = vmatpush.xpose.msra.mxu0 0.0
    %73 = vmatpush.xpose.msra.mxu0 0.0
    %74 = vmatpush.xpose.msra.mxu0 %v30
    %75 = vmatpush.xpose.msra.mxu0 %v23
    %76 = vmatmul.f32.gmra.mxu0 %v16
    %v77 = vpop.f32.mrf.mxu0
    %v78 = vadd.f32 %v58, %v77
    %79 = vdwg.mxu0
    %80 = vmatpush.xpose.msra.mxu0 0.0
    %81 = vmatpush.xpose.msra.mxu0 0.0
    %82 = vmatpush.xpose.msra.mxu0 0.0
    %83 = vmatpush.xpose.msra.mxu0 0.0
    %84 = vmatpush.xpose.msra.mxu0 0.0
    %85 = vmatpush.xpose.msra.mxu0 0.0
    %86 = vmatpush.xpose.msra.mxu0 0.0
    %87 = vmatpush.xpose.msra.mxu0 0.0
    %88 = vmatpush.xpose.msra.mxu0 0.0
    %89 = vmatpush.xpose.msra.mxu0 0.0
    %90 = vmatpush.xpose.msra.mxu0 0.0
    %91 = vmatpush.xpose.msra.mxu0 0.0
    %92 = vmatpush.xpose.msra.mxu0 0.0
    %93 = vmatpush.xpose.msra.mxu0 0.0
    %94 = vmatpush.xpose.msra.mxu0 %v31
    %95 = vmatpush.xpose.msra.mxu0 %v24
    %96 = vmatmul.f32.gmra.mxu0 %v17
    %v97 = vpop.f32.mrf.mxu0
    %v98 = vadd.f32 %v78, %v97
    %99 = vdwg.mxu0
    %100 = vmatpush.xpose.msra.mxu0 0.0
    %101 = vmatpush.xpose.msra.mxu0 0.0
    %102 = vmatpush.xpose.msra.mxu0 0.0
    %103 = vmatpush.xpose.msra.mxu0 0.0
    %104 = vmatpush.xpose.msra.mxu0 0.0
    %105 = vmatpush.xpose.msra.mxu0 0.0
    %106 = vmatpush.xpose.msra.mxu0 0.0
    %107 = vmatpush.xpose.msra.mxu0 0.0
    %108 = vmatpush.xpose.msra.mxu0 0.0
    %109 = vmatpush.xpose.msra.mxu0 0.0
    %110 = vmatpush.xpose.msra.mxu0 0.0
    %111 = vmatpush.xpose.msra.mxu0 0.0
    %112 = vmatpush.xpose.msra.mxu0 0.0
    %113 = vmatpush.xpose.msra.mxu0 0.0
    %114 = vmatpush.xpose.msra.mxu0 %v32
    %115 = vmatpush.xpose.msra.mxu0 %v25
    %116 = vmatmul.f32.gmra.mxu0 %v18
    %v117 = vpop.f32.mrf.mxu0
    %v118 = vadd.f32 %v98, %v117
    %119 = vdwg.mxu0
    %120 = vmatpush.xpose.msra.mxu0 0.0
    %121 = vmatpush.xpose.msra.mxu0 0.0
    %122 = vmatpush.xpose.msra.mxu0 0.0
    %123 = vmatpush.xpose.msra.mxu0 0.0
    %124 = vmatpush.xpose.msra.mxu0 0.0
    %125 = vmatpush.xpose.msra.mxu0 0.0
    %126 = vmatpush.xpose.msra.mxu0 0.0
    %127 = vmatpush.xpose.msra.mxu0 0.0
    %128 = vmatpush.xpose.msra.mxu0 0.0
    %129 = vmatpush.xpose.msra.mxu0 0.0
    %130 = vmatpush.xpose.msra.mxu0 0.0
    %131 = vmatpush.xpose.msra.mxu0 0.0
    %132 = vmatpush.xpose.msra.mxu0 0.0
    %133 = vmatpush.xpose.msra.mxu0 0.0
    %134 = vmatpush.xpose.msra.mxu0 %v33
    %135 = vmatpush.xpose.msra.mxu0 %v26
    %136 = vmatmul.f32.gmra.mxu0 %v19
    %v137 = vpop.f32.mrf.mxu0
    %v138 = vadd.f32 %v118, %v137
    %139 = vdwg.mxu0
    %140 = vmatpush.xpose.msra.mxu0 0.0
    %141 = vmatpush.xpose.msra.mxu0 0.0
    %142 = vmatpush.xpose.msra.mxu0 0.0
    %143 = vmatpush.xpose.msra.mxu0 0.0
    %144 = vmatpush.xpose.msra.mxu0 0.0
    %145 = vmatpush.xpose.msra.mxu0 0.0
    %146 = vmatpush.xpose.msra.mxu0 0.0
    %147 = vmatpush.xpose.msra.mxu0 0.0
    %148 = vmatpush.xpose.msra.mxu0 0.0
    %149 = vmatpush.xpose.msra.mxu0 0.0
    %150 = vmatpush.xpose.msra.mxu0 0.0
    %151 = vmatpush.xpose.msra.mxu0 0.0
    %152 = vmatpush.xpose.msra.mxu0 0.0
    %153 = vmatpush.xpose.msra.mxu0 0.0
    %154 = vmatpush.xpose.msra.mxu0 %v34
    %155 = vmatpush.xpose.msra.mxu0 %v27
    %156 = vmatmul.f32.gmra.mxu0 %v20
    %v157 = vpop.f32.mrf.mxu0
    %v158 = vadd.f32 %v138, %v157
    %159 = vdwg.mxu0
    %160 = vmatpush.xpose.msra.mxu0 0.0
    %161 = vmatpush.xpose.msra.mxu0 0.0
    %162 = vmatpush.xpose.msra.mxu0 0.0
    %163 = vmatpush.xpose.msra.mxu0 0.0
    %164 = vmatpush.xpose.msra.mxu0 0.0
    %165 = vmatpush.xpose.msra.mxu0 0.0
    %166 = vmatpush.xpose.msra.mxu0 0.0
    %167 = vmatpush.xpose.msra.mxu0 0.0
    %168 = vmatpush.xpose.msra.mxu0 0.0
    %169 = vmatpush.xpose.msra.mxu0 0.0
    %170 = vmatpush.xpose.msra.mxu0 0.0
    %171 = vmatpush.xpose.msra.mxu0 0.0
    %172 = vmatpush.xpose.msra.mxu0 0.0
    %173 = vmatpush.xpose.msra.mxu0 0.0
    %174 = vmatpush.xpose.msra.mxu0 %v35
    %175 = vmatpush.xpose.msra.mxu0 %v28
    %176 = vmatmul.f32.gmra.mxu0 %v21
    %v177 = vpop.f32.mrf.mxu0
    %v178 = vadd.f32 %v158, %v177
    %179 = vdwg.mxu0
    %vm180 = vcmask 130048
    %181 = vst.msk [vmem:[#allocation2] sm:$0xff] %vm180, %v178
    // Predicated region
    $region14: #{forward.1} parent=1 // pred_check
      _
    $region15: #{forward.1} parent=1 // pred_check_branch
      %183 = sbr.rel (0) target = $region17
    $region16: #{forward.1} parent=1 // pred_region
      %185 = vsyncadd [#allocation3], 0
      %s187 = sshll.u32 [#allocation2], 4
      %s188 = int_to_ptr.vmem [resolvable:$true] %s187
      %s189 = sshll.u32 %s3, 4
      %s190 = int_to_ptr.hbm [resolvable:$true] %s189
      %192 = dma.vmem_to_hbm [thread:$0]  %s188, 128, %s190, [#allocation3]
    $region17: #{forward.1} parent=1 // pred_fallthru
      _
    // Predicated region
    $region18: #{forward.1} parent=1 // pred_check
      _
    $region19: #{forward.1} parent=1 // pred_check_branch
      %194 = sbr.rel (0) target = $region21
    $region20: #{forward.1} parent=1 // pred_region
      %196 = dma.done [#allocation3], 128
    $region21: #{forward.1} parent=1 // pred_fallthru
      _
    %197 = vsyncpa [#allocation3], 1

</llo_original>
